<compile_context>
chip_gen: v7x
topology: tpu7x:2x2x1
jax: 0.10.0
libtpu: 0.0.40
codegen_flags: <defaults>
</compile_context>

<pallas_src>
import jax
import jax.numpy as jnp
from jax.experimental import pallas as pl
from jax.experimental.pallas import tpu as pltpu

INPUT_CHANNELS = 66
HIDDEN_CHANNELS = 64
OUTPUT_CHANNELS = 1
LN_EPS = 1e-5  # PyTorch F.layer_norm default eps
DEFAULT_TILE_M = 8192  # rows per grid step (multiple of 128; ~2 MiB of input/tile)


def mlp_kernel(x_ref, w1_ref, b1_ref, w2_ref, b2_ref, o_ref):
    # x_ref : (TM, 66)  activation tile (streamed, double-buffered)
    # w1_ref: (66, 64)  fc weight      (resident: constant block index)
    # b1_ref: (1, 64)   fc bias
    # w2_ref: (O, 64)   fc2 weight stored as rows (O = 1)
    # b2_ref: (O, 1)    fc2 bias
    # o_ref : (O, TM)   output tile, lane-dense (rows live in lanes)
    x = x_ref[...]

    # fc: x @ W1 + b1   (MXU matmul, f32 accumulate)
    h = jnp.dot(x, w1_ref[...], preferred_element_type=jnp.float32) + b1_ref[...]

    # layer_norm over the last dim, no affine (matches F.layer_norm(x, x.size()[-1:])).
    # Fused single-pass statistics: var = E[h^2] - mu^2 (clamped for safety).
    inv_n = jnp.float32(1.0 / HIDDEN_CHANNELS)
    s1 = jnp.sum(h, axis=-1, keepdims=True)
    s2 = jnp.sum(h * h, axis=-1, keepdims=True)
    mu = s1 * inv_n
    var = jnp.maximum(s2 * inv_n - mu * mu, 0.0)
    h = (h - mu) * jax.lax.rsqrt(var + LN_EPS)

    # relu
    h = jnp.maximum(h, 0.0)

    # fc2: (O, H) contracted against (TM, H) -> (O, TM). Emitting the result
    # transposed keeps the output lane-dense: one contiguous writeback DMA per tile
    # instead of a (TM, 1) column of masked single-lane stores.
    o = jax.lax.dot_general(
        w2_ref[...], h,
        dimension_numbers=(((1,), (1,)), ((), ())),
        preferred_element_type=jnp.float32,
    ) + b2_ref[...]
    o_ref[...] = o.astype(o_ref.dtype)


def mlp_forward(x, w1, b1, w2, b2, *, tile_m=DEFAULT_TILE_M):
    """x: (bs, N, 66) -> (bs, N, 1). Rows (bs*N) are tiled over a 1-D grid."""
    bs, n, c = x.shape
    assert c == INPUT_CHANNELS
    m = bs * n
    x2d = x.reshape(m, c)
    b1_2d = b1.reshape(1, HIDDEN_CHANNELS)
    w2_rows = w2.reshape(HIDDEN_CHANNELS, OUTPUT_CHANNELS).T  # (O, H)
    b2_2d = b2.reshape(OUTPUT_CHANNELS, 1)

    # Tile size: whole array if small, else a large multiple of 128 so each step's
    # DMA (>= a couple of microseconds) dwarfs the ~0.35us per-step grid overhead
    # while the double-buffered input tile stays well inside VMEM on v5e/v6e/v7x.
    tm = m if m <= tile_m else tile_m
    if tm < m:
        assert tm % 128 == 0, "tile_m must be a multiple of 128 when tiling rows"
    grid = (pl.cdiv(m, tm),)
    # NOTE: when m % tm != 0, the padded rows of the last tile compute on
    # uninitialized data; their output lanes are masked on writeback, so this is
    # harmless by design -- do not "fix" it.

    out = pl.pallas_call(
        mlp_kernel,
        out_shape=jax.ShapeDtypeStruct((OUTPUT_CHANNELS, m), jnp.float32),
        grid=grid,
        in_specs=[
            pl.BlockSpec((tm, INPUT_CHANNELS), lambda i: (i, 0)),              # streamed
            pl.BlockSpec((INPUT_CHANNELS, HIDDEN_CHANNELS), lambda i: (0, 0)),  # resident
            pl.BlockSpec((1, HIDDEN_CHANNELS), lambda i: (0, 0)),               # resident
            pl.BlockSpec((OUTPUT_CHANNELS, HIDDEN_CHANNELS), lambda i: (0, 0)), # resident
            pl.BlockSpec((OUTPUT_CHANNELS, 1), lambda i: (0, 0)),               # resident
        ],
        out_specs=pl.BlockSpec((OUTPUT_CHANNELS, tm), lambda i: (0, i)),
        compiler_params=pltpu.CompilerParams(
            dimension_semantics=("parallel",),   # megacore sharding on v7x
            vmem_limit_bytes=32 * 1024 * 1024,
        ),
    )(x2d, w1, b1_2d, w2_rows, b2_2d)

    # (O, m) -> (bs, N, O); cheap layout plumbing on the tiny output.
    return out.T.reshape(bs, n, OUTPUT_CHANNELS)


def init_params(key):
    """Deterministic init mimicking nn.Linear default (uniform +-1/sqrt(fan_in))."""
    k1, k2, k3, k4 = jax.random.split(key, 4)
    bound1 = 1.0 / jnp.sqrt(jnp.float32(INPUT_CHANNELS))
    bound2 = 1.0 / jnp.sqrt(jnp.float32(HIDDEN_CHANNELS))
    # stored transposed vs torch (in, out) so the kernel can do x @ W directly
    w1 = jax.random.uniform(k1, (INPUT_CHANNELS, HIDDEN_CHANNELS),
                            jnp.float32, -bound1, bound1)
    b1 = jax.random.uniform(k2, (HIDDEN_CHANNELS,), jnp.float32, -bound1, bound1)
    w2 = jax.random.uniform(k3, (HIDDEN_CHANNELS, OUTPUT_CHANNELS),
                            jnp.float32, -bound2, bound2)
    b2 = jax.random.uniform(k4, (OUTPUT_CHANNELS,), jnp.float32, -bound2, bound2)
    return w1, b1, w2, b2


def mlp_reference(x, w1, b1, w2, b2):
    """Pure-JAX reference (two-pass LN, matching the PyTorch module)."""
    h = jnp.einsum("bnc,ch->bnh", x, w1) + b1
    mu = jnp.mean(h, axis=-1, keepdims=True)
    var = jnp.mean((h - mu) ** 2, axis=-1, keepdims=True)
    h = (h - mu) * jax.lax.rsqrt(var + LN_EPS)
    h = jnp.maximum(h, 0.0)
    return jnp.einsum("bnh,ho->bno", h, w2) + b2


if __name__ == "__main__":
    key = jax.random.PRNGKey(0)
    kx, kp = jax.random.split(key)
    w1, b1, w2, b2 = init_params(kp)

    # Small shape consistent with the module's (bs, N, 66) input.
    bs, n = 2, 8
    x = jax.random.normal(kx, (bs, n, INPUT_CHANNELS), jnp.float32)
    out = jax.block_until_ready(mlp_forward(x, w1, b1, w2, b2))
    ref = mlp_reference(x, w1, b1, w2, b2)
    assert out.shape == (bs, n, OUTPUT_CHANNELS), out.shape
    assert jnp.allclose(out, ref, atol=1e-4, rtol=1e-4), "mismatch vs reference (small)"

    # Multi-tile path: exercises the row grid, resident weights, and the masked
    # partial tail tile (400 rows with a 128-row tile -> 3 full tiles + 16 rows).
    bs2, n2 = 2, 200
    x2 = jax.random.normal(jax.random.PRNGKey(1), (bs2, n2, INPUT_CHANNELS), jnp.float32)
    out2 = jax.block_until_ready(mlp_forward(x2, w1, b1, w2, b2, tile_m=128))
    ref2 = mlp_reference(x2, w1, b1, w2, b2)
    assert out2.shape == (bs2, n2, OUTPUT_CHANNELS), out2.shape
    assert jnp.allclose(out2, ref2, atol=1e-4, rtol=1e-4), "mismatch vs reference (tiled)"

    print("KERNEL_OK")
</pallas_src>

<mosaic_0001>
module attributes {stable_mosaic.version = 11 : i64} {
  func.func @mlp_kernel(%arg0: i32, %arg1: memref<16x66xf32, #tpu.memory_space<vmem>>, %arg2: memref<66x64xf32, #tpu.memory_space<vmem>>, %arg3: memref<1x64xf32, #tpu.memory_space<vmem>>, %arg4: memref<1x64xf32, #tpu.memory_space<vmem>>, %arg5: memref<1x1xf32, #tpu.memory_space<vmem>>, %arg6: memref<1x16xf32, #tpu.memory_space<vmem>>) attributes {dimension_semantics = [#tpu.dimension_semantics<parallel>], iteration_bounds = array<i64: 1>, scalar_prefetch = 0 : i64, scratch_operands = 0 : i64, tpu.core_type = #tpu.core_type<tc>, window_params = [{transform_indices = @transform_0, window_bounds = array<i64: 16, 66>}, {pipeline_mode = #tpu.pipeline_mode<synchronous>, transform_indices = @transform_1, window_bounds = array<i64: 66, 64>}, {pipeline_mode = #tpu.pipeline_mode<synchronous>, transform_indices = @transform_2, window_bounds = array<i64: 1, 64>}, {pipeline_mode = #tpu.pipeline_mode<synchronous>, transform_indices = @transform_3, window_bounds = array<i64: 1, 64>}, {pipeline_mode = #tpu.pipeline_mode<synchronous>, transform_indices = @transform_4, window_bounds = array<i64: 1, 1>}, {transform_indices = @transform_5, window_bounds = array<i64: 1, 16>}]} {
    %c0 = arith.constant 0 : index
    %c0_0 = arith.constant 0 : index
    %0 = vector.load %arg1[%c0, %c0_0] : memref<16x66xf32, #tpu.memory_space<vmem>>, vector<16x66xf32>
    %c0_1 = arith.constant 0 : index
    %c0_2 = arith.constant 0 : index
    %1 = vector.load %arg2[%c0_1, %c0_2] : memref<66x64xf32, #tpu.memory_space<vmem>>, vector<66x64xf32>
    %cst = arith.constant dense<0.000000e+00> : vector<16x64xf32>
    %2 = tpu.matmul %0, %1, %cst {dimension_numbers = #tpu.dot_dimension_numbers<[1], [0], [0], [1], [0, 0, 1, 1], [], []>} : vector<16x66xf32>, vector<66x64xf32>, vector<16x64xf32> -> vector<16x64xf32>
    %c0_3 = arith.constant 0 : index
    %c0_4 = arith.constant 0 : index
    %3 = vector.load %arg3[%c0_3, %c0_4] : memref<1x64xf32, #tpu.memory_space<vmem>>, vector<1x64xf32>
    %4 = vector.broadcast %3 : vector<1x64xf32> to vector<16x64xf32>
    %5 = arith.addf %2, %4 : vector<16x64xf32>
    %cst_5 = arith.constant dense<0.000000e+00> : vector<16xf32>
    %6 = vector.multi_reduction <add>, %5, %cst_5 [1] : vector<16x64xf32> to vector<16xf32>
    %7 = vector.shape_cast %6 : vector<16xf32> to vector<16x1xf32>
    %8 = arith.mulf %5, %5 : vector<16x64xf32>
    %cst_6 = arith.constant dense<0.000000e+00> : vector<16xf32>
    %9 = vector.multi_reduction <add>, %8, %cst_6 [1] : vector<16x64xf32> to vector<16xf32>
    %10 = vector.shape_cast %9 : vector<16xf32> to vector<16x1xf32>
    %cst_7 = arith.constant 1.562500e-02 : f32
    %11 = vector.broadcast %cst_7 : f32 to vector<16x1xf32>
    %12 = arith.mulf %7, %11 : vector<16x1xf32>
    %cst_8 = arith.constant 1.562500e-02 : f32
    %13 = vector.broadcast %cst_8 : f32 to vector<16x1xf32>
    %14 = arith.mulf %10, %13 : vector<16x1xf32>
    %15 = arith.mulf %12, %12 : vector<16x1xf32>
    %16 = arith.subf %14, %15 : vector<16x1xf32>
    %cst_9 = arith.constant 0.000000e+00 : f32
    %17 = vector.broadcast %cst_9 : f32 to vector<16x1xf32>
    %18 = arith.maximumf %16, %17 : vector<16x1xf32>
    %19 = vector.broadcast %12 : vector<16x1xf32> to vector<16x64xf32>
    %20 = arith.subf %5, %19 : vector<16x64xf32>
    %cst_10 = arith.constant 9.99999974E-6 : f32
    %21 = vector.broadcast %cst_10 : f32 to vector<16x1xf32>
    %22 = arith.addf %18, %21 : vector<16x1xf32>
    %23 = math.rsqrt %22 : vector<16x1xf32>
    %24 = vector.broadcast %23 : vector<16x1xf32> to vector<16x64xf32>
    %25 = arith.mulf %20, %24 : vector<16x64xf32>
    %cst_11 = arith.constant 0.000000e+00 : f32
    %26 = vector.broadcast %cst_11 : f32 to vector<16x64xf32>
    %27 = arith.maximumf %25, %26 : vector<16x64xf32>
    %c0_12 = arith.constant 0 : index
    %c0_13 = arith.constant 0 : index
    %28 = vector.load %arg4[%c0_12, %c0_13] : memref<1x64xf32, #tpu.memory_space<vmem>>, vector<1x64xf32>
    %cst_14 = arith.constant dense<0.000000e+00> : vector<1x16xf32>
    %29 = tpu.matmul %28, %27, %cst_14 {dimension_numbers = #tpu.dot_dimension_numbers<[1], [1], [0], [0], [0, 0, 1, 0], [], []>} : vector<1x64xf32>, vector<16x64xf32>, vector<1x16xf32> -> vector<1x16xf32>
    %c0_15 = arith.constant 0 : index
    %c0_16 = arith.constant 0 : index
    %30 = vector.load %arg5[%c0_15, %c0_16] : memref<1x1xf32, #tpu.memory_space<vmem>>, vector<1x1xf32>
    %31 = vector.broadcast %30 : vector<1x1xf32> to vector<1x16xf32>
    %32 = arith.addf %29, %31 : vector<1x16xf32>
    %c0_17 = arith.constant 0 : index
    %c0_18 = arith.constant 0 : index
    %33 = vector.load %arg6[%c0_17, %c0_18] : memref<1x16xf32, #tpu.memory_space<vmem>>, vector<1x16xf32>
    tpu.vector_store %arg6[%c0_17, %c0_18], %32 {strides = array<i32>} : memref<1x16xf32, #tpu.memory_space<vmem>>, vector<1x16xf32>,
    return
  }
  func.func @transform_0(%arg0: i32) -> (i32, i32) {
    %c0_i32 = arith.constant 0 : i32
    %c0_i32_0 = arith.constant 0 : i32
    return %arg0, %c0_i32 : i32, i32
  }
  func.func @transform_1(%arg0: i32) -> (i32, i32) {
    %c0_i32 = arith.constant 0 : i32
    %c0_i32_0 = arith.constant 0 : i32
    %c0_i32_1 = arith.constant 0 : i32
    return %c0_i32, %c0_i32_0 : i32, i32
  }
  func.func @transform_2(%arg0: i32) -> (i32, i32) {
    %c0_i32 = arith.constant 0 : i32
    %c0_i32_0 = arith.constant 0 : i32
    %c0_i32_1 = arith.constant 0 : i32
    return %c0_i32, %c0_i32_0 : i32, i32
  }
  func.func @transform_3(%arg0: i32) -> (i32, i32) {
    %c0_i32 = arith.constant 0 : i32
    %c0_i32_0 = arith.constant 0 : i32
    %c0_i32_1 = arith.constant 0 : i32
    return %c0_i32, %c0_i32_0 : i32, i32
  }
  func.func @transform_4(%arg0: i32) -> (i32, i32) {
    %c0_i32 = arith.constant 0 : i32
    %c0_i32_0 = arith.constant 0 : i32
    %c0_i32_1 = arith.constant 0 : i32
    return %c0_i32, %c0_i32_0 : i32, i32
  }
  func.func @transform_5(%arg0: i32) -> (i32, i32) {
    %c0_i32 = arith.constant 0 : i32
    %c0_i32_0 = arith.constant 0 : i32
    return %c0_i32, %arg0 : i32, i32
  }
}

</mosaic_0001>

<llo_original>
// kernel: tpu_custom_call.1
$region0: #{tpu_custom_call.1}
  #allocation0 [shape = 'u32[]', space=smem, size = 0x4, offset = 0x4, fixed_abs, tag = 'smem constant byte address 0x4 - core index']
  #allocation1 [shape = 'u32[144,128]{1,0:T(1,128)}', space=vmem, size = 0x12000, scoped, tag = 'internal scratch']
  #allocation2 [shape = 'f32[1,1]{1,0:T(1,128)S(1)}', space=vmem, size = 0x200, scoped, tag = 'scoped memory for tpu_custom_call.1']
  %s0 = inlined_call_operand.vmem [shape: f32[16,66], index: 0, kind: input, shape index: {}]
  %s1 = inlined_call_operand.vmem [shape: f32[66,64], index: 1, kind: input, shape index: {}]
  %s2 = inlined_call_operand.vmem [shape: f32[1,64], index: 2, kind: input, shape index: {}]
  %s3 = inlined_call_operand.vmem [shape: f32[1,64], index: 3, kind: input, shape index: {}]
  %s4 = inlined_call_operand.<no memory space> [shape: f32[1,1], index: 4, kind: input, shape index: {}]
  %s5 = inlined_call_operand.hbm [shape: f32[1,16], index: 5, kind: output, shape index: {}]
  %s6 = sld [smem:[#allocation0]]
  $region30: #{tpu_custom_call.1} parent=0
    _
  %s8 = ssub.s32 1, %s6
  %s9 = scalar_select 0, %s8, %s6
  %v10 = vstv %s4
  %11 = vst [vmem:[#allocation2] sm:$0x1] %v10
  $region1: #{tpu_custom_call.1} parent=0
    #allocation3 [shape = 'u8[512]{0}', space=vmem, size = 0x400, scoped, tag = 'output window, operand 0, single buffered']
    #allocation4 [shape = 's32[1]{0}', space=sflag, size = 0x4, scoped, tag = 'scoped memory for tpu_custom_call.1']
    %12 = vsyncpa [#allocation4], 0
    // Predicated region
    $region2: #{tpu_custom_call.1} parent=1 // pred_check
      _
    $region3: #{tpu_custom_call.1} parent=1 // pred_check_branch
      %14 = sbr.rel (0) target = $region5
    $region4: #{tpu_custom_call.1} parent=1 // pred_region
      _
    $region5: #{tpu_custom_call.1} parent=1 // pred_fallthru
      _
    // Predicated region
    $region6: #{tpu_custom_call.1} parent=1 // pred_check
      _
    $region7: #{tpu_custom_call.1} parent=1 // pred_check_branch
      %16 = sbr.rel (0) target = $region9
    $region8: #{tpu_custom_call.1} parent=1 // pred_region
      _
    $region9: #{tpu_custom_call.1} parent=1 // pred_fallthru
      _
    // Predicated region
    $region10: #{tpu_custom_call.1} parent=1 // pred_check
      _
    $region11: #{tpu_custom_call.1} parent=1 // pred_check_branch
      %18 = sbr.rel (0) target = $region13
    $region12: #{tpu_custom_call.1} parent=1 // pred_region
      _
    $region13: #{tpu_custom_call.1} parent=1 // pred_fallthru
      _
    // Predicated region
    $region14: #{tpu_custom_call.1} parent=1 // pred_check
      _
    $region15: #{tpu_custom_call.1} parent=1 // pred_check_branch
      %20 = sbr.rel (0) target = $region17
    $region16: #{tpu_custom_call.1} parent=1 // pred_region
      _
    $region17: #{tpu_custom_call.1} parent=1 // pred_fallthru
      _
    // Predicated region
    $region18: #{tpu_custom_call.1} parent=1 // pred_check
      _
    $region19: #{tpu_custom_call.1} parent=1 // pred_check_branch
      %22 = sbr.rel (0) target = $region21
    $region20: #{tpu_custom_call.1} parent=1 // pred_region
      _
    $region21: #{tpu_custom_call.1} parent=1 // pred_fallthru
      _
    %v23 = vld [vmem:[%s0] sm:$0xff]
    %v24 = vld [vmem:[%s0 + $0x8] sm:$0xff]
    %v25 = vld [vmem:[%s1] sm:$0xff]
    %v26 = vld [vmem:[%s1 + $0x8] sm:$0xff]
    %v27 = vld [vmem:[%s1 + $0x10] sm:$0xff]
    %v28 = vld [vmem:[%s1 + $0x18] sm:$0xff]
    %v29 = vld [vmem:[%s1 + $0x20] sm:$0xff]
    %v30 = vld [vmem:[%s1 + $0x28] sm:$0xff]
    %v31 = vld [vmem:[%s1 + $0x30] sm:$0xff]
    %v32 = vld [vmem:[%s1 + $0x38] sm:$0xff]
    %v33 = vld [vmem:[%s1 + $0x40] sm:$0x3]
    %v34 = vld [vmem:[%s2] sm:$0x1]
    %v36 = vlaneseq
    %v37 = vshrl.u32 %v36, 7
    %v38 = vsub.s32 0, %v37
    %v39 = vrot.slane %v34, %v38
    %vm41 = vcmask 539648
    %v43 = vsel %vm41, %v23, 0
    %v46 = vsel %vm41, %v24, 0
    %vm48 = vcmask 1041408
    %v50 = vsel %vm48, %v33, 0
    %52 = vmatprep.subr.mxu0 0.0
    %53 = vmatpush1.msra.mxu0 %v25
    %54 = vmatprep.subr.mxu0 0.0
    %55 = vmatpush1.msra.mxu0 %v26
    %56 = vmatprep.subr.mxu0 0.0
    %57 = vmatpush1.msra.mxu0 %v27
    %58 = vmatprep.subr.mxu0 0.0
    %59 = vmatpush1.msra.mxu0 %v28
    %60 = vmatprep.subr.mxu0 0.0
    %61 = vmatpush1.msra.mxu0 %v29
    %62 = vmatprep.subr.mxu0 0.0
    %63 = vmatpush1.msra.mxu0 %v30
    %64 = vmatprep.subr.mxu0 0.0
    %65 = vmatpush1.msra.mxu0 %v31
    %66 = vmatprep.subr.mxu0 0.0
    %67 = vmatpush1.msra.mxu0 %v32
    %68 = vmatprep.subr.mxu0 0.0
    %69 = vmatpush1.msra.mxu0 %v50
    %70 = vmatprep.subr.mxu0 0.0
    %71 = vmatpush1.msra.mxu0 0.0
    %72 = vmatprep.subr.mxu0 0.0
    %73 = vmatpush1.msra.mxu0 0.0
    %74 = vmatprep.subr.mxu0 0.0
    %75 = vmatpush1.msra.mxu0 0.0
    %76 = vmatprep.subr.mxu0 0.0
    %77 = vmatpush1.msra.mxu0 0.0
    %78 = vmatprep.subr.mxu0 0.0
    %79 = vmatpush1.msra.mxu0 0.0
    %80 = vmatprep.subr.mxu0 0.0
    %81 = vmatpush1.msra.mxu0 0.0
    %82 = vmatprep.subr.mxu0 0.0
    %83 = vmatpush1.msra.mxu0 0.0
    %84 = vmatprep.subr.mxu0 0.0
    %85 = vmatpush1.msra.mxu0 0.0
    %86 = vmatprep.subr.mxu0 0.0
    %87 = vmatpush1.msra.mxu0 0.0
    %88 = vmatprep.subr.mxu0 0.0
    %89 = vmatpush1.msra.mxu0 0.0
    %90 = vmatprep.subr.mxu0 0.0
    %91 = vmatpush1.msra.mxu0 0.0
    %92 = vmatprep.subr.mxu0 0.0
    %93 = vmatpush1.msra.mxu0 0.0
    %94 = vmatprep.subr.mxu0 0.0
    %95 = vmatpush1.msra.mxu0 0.0
    %96 = vmatprep.subr.mxu0 0.0
    %97 = vmatpush1.msra.mxu0 0.0
    %98 = vmatprep.subr.mxu0 0.0
    %99 = vmatpush1.msra.mxu0 0.0
    %100 = vmatprep.subr.mxu0 0.0
    %101 = vmatpush1.msra.mxu0 0.0
    %102 = vmatprep.subr.mxu0 0.0
    %103 = vmatpush1.msra.mxu0 0.0
    %104 = vmatprep.subr.mxu0 0.0
    %105 = vmatpush1.msra.mxu0 0.0
    %106 = vmatprep.subr.mxu0 0.0
    %107 = vmatpush1.msra.mxu0 0.0
    %108 = vmatprep.subr.mxu0 0.0
    %109 = vmatpush1.msra.mxu0 0.0
    %110 = vmatprep.subr.mxu0 0.0
    %111 = vmatpush1.msra.mxu0 0.0
    %112 = vmatprep.subr.mxu0 0.0
    %113 = vmatpush1.msra.mxu0 0.0
    %114 = vmatprep.subr.mxu0 0.0
    %115 = vmatpush1.msra.mxu0 0.0
    %116 = vmatprep.mubr.f32.mxu0 0.0
    %117 = vmatmul.mubr.f32.gmra.mrb[0].mxu0 %v43
    %v118 = vpop.f32.mrb[0].mxu0
    %v119 = vadd.f32 %v39, %v118
    %v120 = vpop.f32.mrb[0].mxu0
    %121 = vmatprep.mubr.f32.mxu0 0.0
    %122 = vmatmul.mubr.f32.gmra.mrb[0].mxu0 %v46
    %v123 = vpop.f32.mrb[0].mxu0
    %v124 = vadd.f32 %v39, %v123
    %v125 = vpop.f32.mrb[0].mxu0
    %126 = vdwg.mxu0
    %vm127 = vcmask 523264
    %v128 = vsel %vm127, %v119, 0.0
    %129 = vadd.xlane.f32.xlu0 %v128
    %v130 = vpop.xlane.xlu0 %129
    %v131 = vsel %vm127, %v124, 0.0
    %132 = vadd.xlane.f32.xlu0 %v131
    %v133 = vpop.xlane.xlu0 %132
    %v134 = vmul.f32 %v119, %v119
    %v135 = vmul.f32 %v124, %v124
    %v136 = vsel %vm127, %v134, 0.0
    %137 = vadd.xlane.f32.xlu0 %v136
    %v138 = vpop.xlane.xlu0 %137
    %v139 = vsel %vm127, %v135, 0.0
    %140 = vadd.xlane.f32.xlu0 %v139
    %v141 = vpop.xlane.xlu0 %140
    %v142 = vmul.f32 %v130, 0.015625
    %v143 = vmul.f32 %v133, 0.015625
    %v144 = vmul.f32 %v138, 0.015625
    %v145 = vmul.f32 %v141, 0.015625
    %v146 = vmul.f32 %v142, %v142
    %v147 = vmul.f32 %v143, %v143
    %v148 = vsub.f32 %v144, %v146
    %v149 = vsub.f32 %v145, %v147
    %v150 = vmax.f32 %v148, 0.0
    %v151 = vmax.f32 %v149, 0.0
    %v152 = vsub.f32 %v119, %v142
    %v153 = vsub.f32 %v124, %v143
    %v154 = vadd.f32 %v150, 1e-05
    %v155 = vadd.f32 %v151, 1e-05
    %v156 = vrsqrt.pop %v154
    %v157 = vrsqrt.pop %v155
    %v158 = vmul.f32 %v152, %v156
    %v159 = vmul.f32 %v153, %v157
    %v160 = vmax.f32 %v158, 0.0
    %v161 = vmax.f32 %v159, 0.0
    %v162 = vld [vmem:[%s3] sm:$0x1]
    %v163 = vld [vmem:[#allocation2] sm:$0x1]
    %165 = vset.pattern.permute.xlu0 0
    %166 = vperm.xlu0 %165, %v163
    %v167 = vpop.permute.xlu0 %166
    %v169 = vlaneseq
    %v170 = vshrl.u32 %v169, 7
    %v171 = vsub.s32 0, %v170
    %v172 = vrot.slane %v167, %v171
    %v174 = vsel %vm127, %v162, 0
    %v177 = vsel %vm127, %v160, 0
    %v180 = vsel %vm127, %v161, 0
    %182 = vmatprep.subr.mxu0 0.0
    %183 = vmatpush1.xpose.msra.mxu0 %v177
    %184 = vmatprep.subr.mxu0 0.0
    %185 = vmatpush1.xpose.msra.mxu0 %v180
    %186 = vmatprep.subr.mxu0 0.0
    %187 = vmatpush1.xpose.msra.mxu0 0.0
    %188 = vmatprep.subr.mxu0 0.0
    %189 = vmatpush1.xpose.msra.mxu0 0.0
    %190 = vmatprep.subr.mxu0 0.0
    %191 = vmatpush1.xpose.msra.mxu0 0.0
    %192 = vmatprep.subr.mxu0 0.0
    %193 = vmatpush1.xpose.msra.mxu0 0.0
    %194 = vmatprep.subr.mxu0 0.0
    %195 = vmatpush1.xpose.msra.mxu0 0.0
    %196 = vmatprep.subr.mxu0 0.0
    %197 = vmatpush1.xpose.msra.mxu0 0.0
    %198 = vmatprep.subr.mxu0 0.0
    %199 = vmatpush1.xpose.msra.mxu0 0.0
    %200 = vmatprep.subr.mxu0 0.0
    %201 = vmatpush1.xpose.msra.mxu0 0.0
    %202 = vmatprep.subr.mxu0 0.0
    %203 = vmatpush1.xpose.msra.mxu0 0.0
    %204 = vmatprep.subr.mxu0 0.0
    %205 = vmatpush1.xpose.msra.mxu0 0.0
    %206 = vmatprep.subr.mxu0 0.0
    %207 = vmatpush1.xpose.msra.mxu0 0.0
    %208 = vmatprep.subr.mxu0 0.0
    %209 = vmatpush1.xpose.msra.mxu0 0.0
    %210 = vmatprep.subr.mxu0 0.0
    %211 = vmatpush1.xpose.msra.mxu0 0.0
    %212 = vmatprep.subr.mxu0 0.0
    %213 = vmatpush1.xpose.msra.mxu0 0.0
    %214 = vmatprep.subr.mxu0 0.0
    %215 = vmatpush1.xpose.msra.mxu0 0.0
    %216 = vmatprep.subr.mxu0 0.0
    %217 = vmatpush1.xpose.msra.mxu0 0.0
    %218 = vmatprep.subr.mxu0 0.0
    %219 = vmatpush1.xpose.msra.mxu0 0.0
    %220 = vmatprep.subr.mxu0 0.0
    %221 = vmatpush1.xpose.msra.mxu0 0.0
    %222 = vmatprep.subr.mxu0 0.0
    %223 = vmatpush1.xpose.msra.mxu0 0.0
    %224 = vmatprep.subr.mxu0 0.0
    %225 = vmatpush1.xpose.msra.mxu0 0.0
    %226 = vmatprep.subr.mxu0 0.0
    %227 = vmatpush1.xpose.msra.mxu0 0.0
    %228 = vmatprep.subr.mxu0 0.0
    %229 = vmatpush1.xpose.msra.mxu0 0.0
    %230 = vmatprep.subr.mxu0 0.0
    %231 = vmatpush1.xpose.msra.mxu0 0.0
    %232 = vmatprep.subr.mxu0 0.0
    %233 = vmatpush1.xpose.msra.mxu0 0.0
    %234 = vmatprep.subr.mxu0 0.0
    %235 = vmatpush1.xpose.msra.mxu0 0.0
    %236 = vmatprep.subr.mxu0 0.0
    %237 = vmatpush1.xpose.msra.mxu0 0.0
    %238 = vmatprep.subr.mxu0 0.0
    %239 = vmatpush1.xpose.msra.mxu0 0.0
    %240 = vmatprep.subr.mxu0 0.0
    %241 = vmatpush1.xpose.msra.mxu0 0.0
    %242 = vmatprep.subr.mxu0 0.0
    %243 = vmatpush1.xpose.msra.mxu0 0.0
    %244 = vmatprep.subr.mxu0 0.0
    %245 = vmatpush1.xpose.msra.mxu0 0.0
    %246 = vmatprep.mubr.f32.mxu0 0.0
    %247 = vmatmul.mubr.f32.gmra.mrb[0].mxu0 %v174
    %v248 = vpop.f32.mrb[0].mxu0
    %v249 = vadd.f32 %v172, %v248
    %v250 = vpop.f32.mrb[0].mxu0
    %251 = vdwg.mxu0
    %vm252 = vcmask 122880
    %253 = vst.msk [vmem:[#allocation3] sm:$0x1] %vm252, %v249
    // Predicated region
    $region22: #{tpu_custom_call.1} parent=1 // pred_check
      _
    $region23: #{tpu_custom_call.1} parent=1 // pred_check_branch
      %255 = sbr.rel (0) target = $region25
    $region24: #{tpu_custom_call.1} parent=1 // pred_region
      %s257 = ssub.s32 16, 16
      %258 = vsyncadd [#allocation4], %s257
      %s260 = sshll.u32 [#allocation3], 4
      %s261 = int_to_ptr.vmem [resolvable:$true] %s260
      %263 = dma.vmem_to_hbm [thread:$0]  %s261, 16, %s5, [#allocation4]
    $region25: #{tpu_custom_call.1} parent=1 // pred_fallthru
      _
    // Predicated region
    $region26: #{tpu_custom_call.1} parent=1 // pred_check
      _
    $region27: #{tpu_custom_call.1} parent=1 // pred_check_branch
      %265 = sbr.rel (0) target = $region29
    $region28: #{tpu_custom_call.1} parent=1 // pred_region
      %266 = dma.done [#allocation4], 16
    $region29: #{tpu_custom_call.1} parent=1 // pred_fallthru
      _
    %267 = vsyncpa [#allocation4], 1

</llo_original>
